<compile_context>
chip_gen: v5e
topology: v5e:2x2
jax: 0.10.0
libtpu: 0.0.40
codegen_flags: <defaults>
</compile_context>

<pallas_src>
import math
import functools

import jax
import jax.numpy as jnp
from jax.experimental import pallas as pl
from jax.experimental.pallas import tpu as pltpu


def _pe_kernel(freq_ref, off_ref, sin_ref, cos_ref, *, tile_rows: int,
               lane_width: int, fold: int):
    """One grid step: rows [i*tile_rows, (i+1)*tile_rows) of both half-tables.

    flat row r, lane c:
      pe_row = r * fold + off[c]        (exact integer, f32-representable)
      angle  = pe_row * freq[c]         (single rounding, matches torch table)
      sin_ref = sin(angle) ; cos_ref = cos(angle)
    Padded lanes have freq = 0 -> angle 0; they are cropped in the wrapper.
    """
    i = pl.program_id(0)
    row0 = (i * tile_rows).astype(jnp.float32)
    row = jax.lax.broadcasted_iota(jnp.int32, (tile_rows, lane_width), 0
                                   ).astype(jnp.float32) + row0
    if fold != 1:
        row = row * jnp.float32(fold) + off_ref[...]
    angle = row * freq_ref[...]
    sin_ref[...] = jnp.sin(angle)
    cos_ref[...] = jnp.cos(angle)


@functools.lru_cache(maxsize=None)
def _pe_table(seq_len: int, d_model: int) -> jax.Array:
    """Build the (1, seq_len, d_model) f32 sinusoidal table once per shape."""
    assert d_model >= 2 and d_model % 2 == 0, "d_model must be even"
    assert seq_len >= 1
    d_half = d_model // 2                       # number of distinct frequencies

    # ---- lane-dense layout: last dim is always a multiple of 128 -----------
    if d_half >= 128:
        d_half_pad = ((d_half + 127) // 128) * 128
        fold = 1                                # one pe-row per flat row
    else:
        d_half_pad = 1 << (d_half - 1).bit_length()   # next power of two
        fold = 128 // d_half_pad                # pe-rows packed per flat row
    lane_width = d_half_pad * fold              # multiple of 128 on every path

    # ---- tiny resident column rows (computed once, DMA'd once) -------------
    w = jnp.exp(jnp.arange(0, d_model, 2, dtype=jnp.float32)
                * (-math.log(10000.0) / d_model))              # (d_half,)
    w_pad = jnp.zeros((d_half_pad,), jnp.float32).at[:d_half].set(w)
    freq_row = jnp.tile(w_pad, fold)[None, :]                   # (1, lane_width)
    off_row = jnp.repeat(jnp.arange(fold, dtype=jnp.float32),
                         d_half_pad)[None, :]                   # (1, lane_width)

    # ---- row tiling ---------------------------------------------------------
    rows_needed = -(-seq_len // fold)
    # 2 outputs x 2 pipeline buffers x tile_rows x lane_width x 4B <= 8 MiB.
    vmem_cap = max(8, ((8 * 1024 * 1024) // (16 * lane_width)) // 8 * 8)
    tile_rows = min(1024, vmem_cap)
    if rows_needed >= 16:                       # >=2 grid steps -> v7x megacore
        tile_rows = min(tile_rows, max(8, (rows_needed // 2) // 8 * 8))
    num_tiles = -(-rows_needed // tile_rows)
    tile_rows = ((-(-rows_needed // num_tiles) + 7) // 8) * 8   # balanced, /8
    rows_total = num_tiles * tile_rows          # no ragged last block

    kernel = functools.partial(_pe_kernel, tile_rows=tile_rows,
                               lane_width=lane_width, fold=fold)
    row_spec = pl.BlockSpec((1, lane_width), lambda i: (0, 0))
    out_spec = pl.BlockSpec((tile_rows, lane_width), lambda i: (i, 0))
    out_sd = jax.ShapeDtypeStruct((rows_total, lane_width), jnp.float32)

    sin_flat, cos_flat = pl.pallas_call(
        kernel,
        out_shape=(out_sd, out_sd),
        grid_spec=pltpu.PrefetchScalarGridSpec(
            num_scalar_prefetch=0,
            grid=(num_tiles,),
            in_specs=[row_spec, row_spec],
            out_specs=[out_spec, out_spec],
        ),
        compiler_params=pltpu.CompilerParams(
            dimension_semantics=("parallel",)),
    )(freq_row, off_row)

    # ---- wrapper-side layout plumbing: un-fold, crop padding, interleave ---
    sin_t = sin_flat.reshape(rows_total * fold, d_half_pad)[:seq_len, :d_half]
    cos_t = cos_flat.reshape(rows_total * fold, d_half_pad)[:seq_len, :d_half]
    pe = jnp.stack([sin_t, cos_t], axis=-1).reshape(seq_len, d_model)
    return pe[None, :, :]


def positional_embedding(x: jax.Array, d_model: int) -> jax.Array:
    """Equivalent of PositionalEmbedding(d_model)(x): (1, seq_len, d_model) f32.

    The table is input-independent; it is computed (and the kernel run)
    exactly once per (seq_len, d_model) and cached thereafter.
    """
    return _pe_table(int(x.shape[1]), int(d_model))


def _reference(seq_len: int, d_model: int) -> jnp.ndarray:
    """Pure-JAX reference mirroring the PyTorch buffer construction."""
    position = jnp.arange(seq_len, dtype=jnp.float32)[:, None]
    div_term = jnp.exp(
        jnp.arange(0, d_model, 2, dtype=jnp.float32) * (-math.log(10000.0) / d_model))
    pe = jnp.zeros((seq_len, d_model), jnp.float32)
    pe = pe.at[:, 0::2].set(jnp.sin(position * div_term))
    pe = pe.at[:, 1::2].set(jnp.cos(position * div_term))
    return pe[None]


if __name__ == "__main__":
    key = jax.random.PRNGKey(0)

    # Primary check: matches the PyTorch module at a small shape.
    d_model, batch, seq_len = 32, 2, 8
    x = jax.random.normal(key, (batch, seq_len, d_model), dtype=jnp.float32)
    out = jax.block_until_ready(positional_embedding(x, d_model))
    ref = _reference(seq_len, d_model)
    assert out.shape == (1, seq_len, d_model), out.shape
    assert out.dtype == jnp.float32, out.dtype
    assert jnp.allclose(out, ref, atol=1e-5, rtol=1e-5), "mismatch (d_model=32)"

    # Second call hits the per-shape cache (no kernel relaunch).
    out2 = positional_embedding(x, d_model)
    assert jnp.allclose(out2, ref, atol=1e-5, rtol=1e-5)

    # d_half >= 128 path (no folding) + 2-step grid at a small shape.
    x256 = jax.random.normal(key, (1, 16, 256), dtype=jnp.float32)
    out256 = jax.block_until_ready(positional_embedding(x256, 256))
    assert jnp.allclose(out256, _reference(16, 256), atol=1e-5, rtol=1e-5), \
        "mismatch (d_model=256)"

    # Padded-frequency path (d_half=10 -> padded to 16, fold=8).
    x20 = jax.random.normal(key, (1, 8, 20), dtype=jnp.float32)
    out20 = jax.block_until_ready(positional_embedding(x20, 20))
    assert jnp.allclose(out20, _reference(8, 20), atol=1e-5, rtol=1e-5), \
        "mismatch (d_model=20)"

    # Longer sequence: multi-tile grid and the true-cos odd columns.
    x512 = jax.random.normal(key, (1, 512, 64), dtype=jnp.float32)
    out512 = jax.block_until_ready(positional_embedding(x512, 64))
    assert jnp.allclose(out512, _reference(512, 64), atol=2e-4, rtol=1e-4), \
        "mismatch (seq=512, d_model=64)"

    print("KERNEL_OK")
</pallas_src>

<mosaic_0001>
module attributes {stable_mosaic.version = 11 : i64} {
  func.func @_pe_kernel(%arg0: i32, %arg1: memref<1x128xf32, #tpu.memory_space<vmem>>, %arg2: memref<1x128xf32, #tpu.memory_space<vmem>>, %arg3: memref<8x128xf32, #tpu.memory_space<vmem>>, %arg4: memref<8x128xf32, #tpu.memory_space<vmem>>) attributes {dimension_semantics = [#tpu.dimension_semantics<parallel>], iteration_bounds = array<i64: 1>, scalar_prefetch = 0 : i64, scratch_operands = 0 : i64, tpu.core_type = #tpu.core_type<tc>, window_params = [{pipeline_mode = #tpu.pipeline_mode<synchronous>, transform_indices = @transform_0, window_bounds = array<i64: 1, 128>}, {pipeline_mode = #tpu.pipeline_mode<synchronous>, transform_indices = @transform_1, window_bounds = array<i64: 1, 128>}, {transform_indices = @transform_2, window_bounds = array<i64: 8, 128>}, {transform_indices = @transform_3, window_bounds = array<i64: 8, 128>}]} {
    %c8_i32 = arith.constant 8 : i32
    %0 = arith.muli %arg0, %c8_i32 : i32
    %1 = arith.sitofp %0 : i32 to f32
    %2 = tpu.iota {dimensions = array<i32: 0>} : vector<8x128xi32>
    %3 = arith.sitofp %2 : vector<8x128xi32> to vector<8x128xf32>
    %4 = vector.broadcast %1 : f32 to vector<8x128xf32>
    %5 = arith.addf %3, %4 : vector<8x128xf32>
    %cst = arith.constant 8.000000e+00 : f32
    %6 = vector.broadcast %cst : f32 to vector<8x128xf32>
    %7 = arith.mulf %5, %6 : vector<8x128xf32>
    %c0 = arith.constant 0 : index
    %c0_0 = arith.constant 0 : index
    %8 = vector.load %arg2[%c0, %c0_0] : memref<1x128xf32, #tpu.memory_space<vmem>>, vector<1x128xf32>
    %9 = vector.broadcast %8 : vector<1x128xf32> to vector<8x128xf32>
    %10 = arith.addf %7, %9 : vector<8x128xf32>
    %c0_1 = arith.constant 0 : index
    %c0_2 = arith.constant 0 : index
    %11 = vector.load %arg1[%c0_1, %c0_2] : memref<1x128xf32, #tpu.memory_space<vmem>>, vector<1x128xf32>
    %12 = vector.broadcast %11 : vector<1x128xf32> to vector<8x128xf32>
    %13 = arith.mulf %10, %12 : vector<8x128xf32>
    %14 = math.sin %13 : vector<8x128xf32>
    %c0_3 = arith.constant 0 : index
    %c0_4 = arith.constant 0 : index
    %15 = vector.load %arg3[%c0_3, %c0_4] : memref<8x128xf32, #tpu.memory_space<vmem>>, vector<8x128xf32>
    tpu.vector_store %arg3[%c0_3, %c0_4], %14 {strides = array<i32>} : memref<8x128xf32, #tpu.memory_space<vmem>>, vector<8x128xf32>,
    %16 = math.cos %13 : vector<8x128xf32>
    %c0_5 = arith.constant 0 : index
    %c0_6 = arith.constant 0 : index
    %17 = vector.load %arg4[%c0_5, %c0_6] : memref<8x128xf32, #tpu.memory_space<vmem>>, vector<8x128xf32>
    tpu.vector_store %arg4[%c0_5, %c0_6], %16 {strides = array<i32>} : memref<8x128xf32, #tpu.memory_space<vmem>>, vector<8x128xf32>,
    return
  }
  func.func @transform_0(%arg0: i32) -> (i32, i32) {
    %c0_i32 = arith.constant 0 : i32
    %c0_i32_0 = arith.constant 0 : i32
    %c0_i32_1 = arith.constant 0 : i32
    return %c0_i32, %c0_i32_0 : i32, i32
  }
  func.func @transform_1(%arg0: i32) -> (i32, i32) {
    %c0_i32 = arith.constant 0 : i32
    %c0_i32_0 = arith.constant 0 : i32
    %c0_i32_1 = arith.constant 0 : i32
    return %c0_i32, %c0_i32_0 : i32, i32
  }
  func.func @transform_2(%arg0: i32) -> (i32, i32) {
    %c0_i32 = arith.constant 0 : i32
    %c0_i32_0 = arith.constant 0 : i32
    return %arg0, %c0_i32 : i32, i32
  }
  func.func @transform_3(%arg0: i32) -> (i32, i32) {
    %c0_i32 = arith.constant 0 : i32
    %c0_i32_0 = arith.constant 0 : i32
    return %arg0, %c0_i32 : i32, i32
  }
}

</mosaic_0001>

<llo_original>
// kernel: tpu_custom_call.1
$region0: #{tpu_custom_call.1}
  #allocation0 [shape = 'u32[]', space=smem, size = 0x4, offset = 0x4, fixed_abs, tag = 'smem constant byte address 0x4 - core index']
  #allocation1 [shape = 'u32[72,128]{1,0:T(1,128)}', space=vmem, size = 0x9000, scoped, tag = 'internal scratch']
  %s0 = inlined_call_operand.hbm [shape: f32[1,128], index: 0, kind: input, shape index: {}]
  %s1 = inlined_call_operand.hbm [shape: f32[1,128], index: 1, kind: input, shape index: {}]
  %s2 = inlined_call_operand.hbm [shape: f32[8,128], index: 2, kind: output, shape index: {0}]
  %s3 = inlined_call_operand.hbm [shape: f32[8,128], index: 3, kind: output, shape index: {1}]
  %4 = xla_tuple %s2, %s3
  %s5 = sld [smem:[#allocation0]]
  $region34: #{tpu_custom_call.1} parent=0
    _
  %s7 = ssub.s32 1, %s5
  %s8 = scalar_select 0, %s7, %s5
  $region1: #{tpu_custom_call.1} parent=0
    #allocation2 [shape = 'u8[512]{0}', space=vmem, size = 0x400, scoped, tag = 'input window, operand 0, single buffered']
    #allocation3 [shape = 's32[1]{0}', space=sflag, size = 0x4, scoped, tag = 'scoped memory for tpu_custom_call.1']
    #allocation4 [shape = 's32[1]{0}', space=sflag, size = 0x4, scoped, tag = 'scoped memory for tpu_custom_call.1']
    #allocation5 [shape = 'u8[512]{0}', space=vmem, size = 0x400, scoped, tag = 'input window, operand 1, single buffered']
    #allocation6 [shape = 's32[1]{0}', space=sflag, size = 0x4, scoped, tag = 'scoped memory for tpu_custom_call.1']
    #allocation7 [shape = 'u8[4096]{0}', space=vmem, size = 0x1000, scoped, tag = 'output window, operand 0, single buffered']
    #allocation8 [shape = 'u8[4096]{0}', space=vmem, size = 0x1000, scoped, tag = 'output window, operand 1, single buffered']
    #allocation9 [shape = 's32[1]{0}', space=sflag, size = 0x4, scoped, tag = 'scoped memory for tpu_custom_call.1']
    %9 = vsyncpa [#allocation3], 0
    %10 = vsyncpa [#allocation6], 0
    %11 = vsyncpa [#allocation4], 0
    %12 = vsyncpa [#allocation9], 0
    // Predicated region
    $region2: #{tpu_custom_call.1} parent=1 // pred_check
      _
    $region3: #{tpu_custom_call.1} parent=1 // pred_check_branch
      %14 = sbr.rel (0) target = $region5
    $region4: #{tpu_custom_call.1} parent=1 // pred_region
      %16 = vsyncadd [#allocation3], 0
      %s18 = sshll.u32 %s0, 4
      %s19 = int_to_ptr.hbm [resolvable:$true] %s18
      %s20 = sshll.u32 [#allocation2], 4
      %s21 = int_to_ptr.vmem [resolvable:$true] %s20
      %23 = dma.hbm_to_vmem [thread:$0]  %s19, 16, %s21, [#allocation3]
    $region5: #{tpu_custom_call.1} parent=1 // pred_fallthru
      _
    // Predicated region
    $region6: #{tpu_custom_call.1} parent=1 // pred_check
      _
    $region7: #{tpu_custom_call.1} parent=1 // pred_check_branch
      %25 = sbr.rel (0) target = $region9
    $region8: #{tpu_custom_call.1} parent=1 // pred_region
      %27 = vsyncadd [#allocation6], 0
      %s29 = sshll.u32 %s1, 4
      %s30 = int_to_ptr.hbm [resolvable:$true] %s29
      %s31 = sshll.u32 [#allocation5], 4
      %s32 = int_to_ptr.vmem [resolvable:$true] %s31
      %34 = dma.hbm_to_vmem [thread:$0]  %s30, 16, %s32, [#allocation6]
    $region9: #{tpu_custom_call.1} parent=1 // pred_fallthru
      _
    // Predicated region
    $region10: #{tpu_custom_call.1} parent=1 // pred_check
      _
    $region11: #{tpu_custom_call.1} parent=1 // pred_check_branch
      %36 = sbr.rel (0) target = $region13
    $region12: #{tpu_custom_call.1} parent=1 // pred_region
      %38 = dma.done [#allocation3], 16
    $region13: #{tpu_custom_call.1} parent=1 // pred_fallthru
      _
    // Predicated region
    $region14: #{tpu_custom_call.1} parent=1 // pred_check
      _
    $region15: #{tpu_custom_call.1} parent=1 // pred_check_branch
      %40 = sbr.rel (0) target = $region17
    $region16: #{tpu_custom_call.1} parent=1 // pred_region
      %42 = dma.done [#allocation6], 16
    $region17: #{tpu_custom_call.1} parent=1 // pred_fallthru
      _
    %s43 = smul.u32 0, 8
    %s44 = scvt.s32.f32 %s43
    %v45 = vlaneseq
    %v46 = vshrl.u32 %v45, 7
    %v47 = vcvt.s32.f32 %v46
    %v48 = vstv %s44
    %v49 = vadd.f32 %v47, %v48
    %v50 = vmul.f32 %v49, 8.0
    %v51 = vld [vmem:[#allocation5] sm:$0x1]
    %v53 = vperm.slane %v51, 0
    %v55 = vadd.f32 %v50, %v53
    %v56 = vld [vmem:[#allocation2] sm:$0x1]
    %v58 = vperm.slane %v56, 0
    %v60 = vmul.f32 %v55, %v58
    %v61 = vand.u32 2147483647, %v60
    %vm62 = vcmp.le.f32.partialorder %v61, 0.7853982
    %vm63 = vcmp.lt.s32.totalorder %v60, 0
    %v64 = vand.u32 %v60, 2139095040
    %v65 = vshrl.u32 %v64, 23
    %v66 = vsub.s32 %v65, 127
    %v67 = vand.u32 2147483647, %v60
    %v68 = vand.u32 %v67, 8388607
    %v69 = vor.u32 %v68, 8388608
    %v70 = vsub.s32 0, %v69
    %v71 = vadd.s32 %v66, 1
    %vm72 = vcmp.gt.s32.totalorder %v71, 0
    %v73 = vsel %vm72, %v71, 0
    %v74 = vshrl.u32 %v73, 5
    %v75 = vand.u32 %v73, 31
    %v76 = vsub.s32 32, %v75
    %v77 = vshrl.u32 683565275, %v76
    %v78 = vshll.u32 683565275, %v75
    %v79 = vshrl.u32 2475754826, %v76
    %v80 = vor.u32 %v78, %v79
    %v81 = vshll.u32 2475754826, %v75
    %v82 = vshrl.u32 2131351028, %v76
    %v83 = vor.u32 %v81, %v82
    %v84 = vshll.u32 2131351028, %v75
    %v85 = vshrl.u32 2102212464, %v76
    %v86 = vor.u32 %v84, %v85
    %v87 = vshll.u32 2102212464, %v75
    %v88 = vshrl.u32 920167782, %v76
    %v89 = vor.u32 %v87, %v88
    %v90 = vshll.u32 920167782, %v75
    %v91 = vshrl.u32 1326507024, %v76
    %v92 = vor.u32 %v90, %v91
    %vm93 = vcmp.lt.s32.totalorder %v74, 1
    %vm94 = vcmp.lt.s32.totalorder %v74, 2
    %vm95 = vcmp.lt.s32.totalorder %v74, 3
    %vm96 = vcmp.lt.s32.totalorder %v74, 4
    %v97 = vsel %vm93, %v77, %v80
    %v98 = vsel %vm96, %v86, 2102212464
    %v99 = vsel %vm95, %v83, %v98
    %v100 = vsel %vm94, %v97, %v99
    %v101 = vsel %vm93, %v80, %v83
    %v102 = vsel %vm96, %v89, 920167782
    %v103 = vsel %vm95, %v86, %v102
    %v104 = vsel %vm94, %v101, %v103
    %v105 = vsel %vm93, %v83, %v86
    %v106 = vsel %vm96, %v92, 1326507024
    %v107 = vsel %vm95, %v89, %v106
    %v108 = vsel %vm94, %v105, %v107
    %v109 = vshll.u32 %v69, 8
    %v110 = vand.u32 %v109, 65535
    %v111 = vshrl.u32 %v109, 16
    %v112 = vand.u32 %v108, 65535
    %v113 = vshrl.u32 %v108, 16
    %v114 = vmul.u32 %v110, %v112
    %v115 = vmul.u32 %v110, %v113
    %v116 = vmul.u32 %v111, %v112
    %v117 = vmul.u32 %v111, %v113
    %v118 = vshll.u32 %v115, 16
    %v119 = vshrl.u32 %v115, 16
    %v120 = vshll.u32 %v116, 16
    %v121 = vshrl.u32 %v116, 16
    %vm122 = vc.u32 %v114, %v118
    %v123 = vsel %vm122, 1, 0
    %v124 = vadd.s32 %v114, %v118
    %v125 = vadd.s32 %v117, %v123
    %vm126 = vc.u32 %v124, %v120
    %v127 = vsel %vm126, 1, 0
    %v128 = vadd.s32 %v124, %v120
    %v129 = vadd.s32 %v125, %v127
    %v130 = vadd.s32 %v129, %v119
    %v131 = vadd.s32 %v130, %v121
    %v132 = vand.u32 %v109, 65535
    %v133 = vshrl.u32 %v109, 16
    %v134 = vand.u32 %v104, 65535
    %v135 = vshrl.u32 %v104, 16
    %v136 = vmul.u32 %v132, %v134
    %v137 = vmul.u32 %v132, %v135
    %v138 = vmul.u32 %v133, %v134
    %v139 = vmul.u32 %v133, %v135
    %v140 = vshll.u32 %v137, 16
    %v141 = vshrl.u32 %v137, 16
    %v142 = vshll.u32 %v138, 16
    %v143 = vshrl.u32 %v138, 16
    %vm144 = vc.u32 %v136, %v140
    %v145 = vsel %vm144, 1, 0
    %v146 = vadd.s32 %v136, %v140
    %v147 = vadd.s32 %v139, %v145
    %vm148 = vc.u32 %v146, %v142
    %v149 = vsel %vm148, 1, 0
    %v150 = vadd.s32 %v146, %v142
    %v151 = vadd.s32 %v147, %v149
    %v152 = vadd.s32 %v151, %v141
    %v153 = vadd.s32 %v152, %v143
    %v154 = vmul.u32 %v109, %v100
    %v155 = vadd.s32 %v131, %v150
    %vm156 = vc.u32 %v131, %v150
    %v157 = vadd.s32 %v153, 1
    %v158 = vsel %vm156, %v157, %v153
    %v159 = vadd.s32 %v154, %v158
    %v160 = vadd.s32 %v159, 536870912
    %v161 = vshrl.u32 %v160, 30
    %v162 = vshll.u32 %v161, 30
    %v163 = vsub.s32 %v159, %v162
    %vm164 = vcmp.lt.s32.totalorder %v163, 0
    %v165 = vsub.s32 0, %v163
    %v166 = vsel %vm164, %v165, %v163
    %v167 = vclz %v166
    %v168 = vsub.s32 %v167, 2
    %vm169 = vcmp.gt.s32.totalorder 0, %v168
    %v170 = vsel %vm169, 0, %v168
    %v171 = vsub.s32 32, %v170
    %v172 = vshll.u32 %v163, %v170
    %v173 = vshrl.u32 %v155, %v171
    %v174 = vor.u32 %v172, %v173
    %v175 = vsub.s32 4294967266, %v170
    %v176 = vadd.s32 %v175, 127
    %v177 = vshll.u32 %v176, 23
    %v178 = vor.u32 4788187, %v177
    %v179 = vand.u32 2147483647, %v178
    %v181 = vcvt.s32.f32 %v174
    %v182 = vmul.f32 %v181, %v179
    %v183 = vxor.u32 %v182, 2147483648
    %v184 = vsel %vm63, %v183, %v182
    %v185 = vsub.s32 4, %v161
    %v186 = vsel %vm63, %v185, %v161
    %v187 = vsel %vm62, %v60, %v184
    %v188 = vsel %vm62, 0, %v186
    %v189 = vmul.f32 %v187, %v187
    %v190 = vmul.f32 %v189, -0.001358992
    %v191 = vadd.f32 %v190, 0.041655596
    %v192 = vmul.f32 %v189, %v191
    %v193 = vadd.f32 %v192, -0.4999988
    %v194 = vmul.f32 %v189, %v193
    %v195 = vadd.f32 1.0, %v194
    %v196 = vmul.f32 %v187, %v187
    %v197 = vmul.f32 %v196, -0.00019511016
    %v198 = vadd.f32 %v197, 0.008332121
    %v199 = vmul.f32 %v196, %v198
    %v200 = vadd.f32 %v199, -0.16666654
    %v201 = vmul.f32 %v196, %v200
    %v202 = vadd.f32 %v201, 1.0
    %v203 = vmul.f32 %v202, %v187
    %vm204 = vweird.f32 %v60
    %v205 = vadd.s32 %v188, 3
    %v206 = vand.u32 %v205, 3
    %vm207 = vcmp.lt.s32.totalorder %v206, 2
    %vm208 = vcmp.eq.s32.totalorder %v206, 0
    %v209 = vxor.u32 %v203, 2147483648
    %v210 = vsel %vm208, %v195, %v209
    %vm211 = vcmp.eq.s32.totalorder %v206, 2
    %v212 = vxor.u32 %v195, 2147483648
    %v213 = vsel %vm211, %v212, %v203
    %v214 = vsel %vm207, %v210, %v213
    %v215 = vsel %vm204, nan, %v214
    %216 = vst [vmem:[#allocation7] sm:$0xff] %v215
    %v217 = vand.u32 2147483647, %v60
    %vm218 = vcmp.le.f32.partialorder %v217, 0.7853982
    %vm219 = vcmp.lt.s32.totalorder %v60, 0
    %v220 = vand.u32 %v60, 2139095040
    %v221 = vshrl.u32 %v220, 23
    %v222 = vsub.s32 %v221, 127
    %v223 = vand.u32 2147483647, %v60
    %v224 = vand.u32 %v223, 8388607
    %v225 = vor.u32 %v224, 8388608
    %v226 = vsub.s32 0, %v225
    %v227 = vadd.s32 %v222, 1
    %vm228 = vcmp.gt.s32.totalorder %v227, 0
    %v229 = vsel %vm228, %v227, 0
    %v230 = vshrl.u32 %v229, 5
    %v231 = vand.u32 %v229, 31
    %v232 = vsub.s32 32, %v231
    %v233 = vshrl.u32 683565275, %v232
    %v234 = vshll.u32 683565275, %v231
    %v235 = vshrl.u32 2475754826, %v232
    %v236 = vor.u32 %v234, %v235
    %v237 = vshll.u32 2475754826, %v231
    %v238 = vshrl.u32 2131351028, %v232
    %v239 = vor.u32 %v237, %v238
    %v240 = vshll.u32 2131351028, %v231
    %v241 = vshrl.u32 2102212464, %v232
    %v242 = vor.u32 %v240, %v241
    %v243 = vshll.u32 2102212464, %v231
    %v244 = vshrl.u32 920167782, %v232
    %v245 = vor.u32 %v243, %v244
    %v246 = vshll.u32 920167782, %v231
    %v247 = vshrl.u32 1326507024, %v232
    %v248 = vor.u32 %v246, %v247
    %vm249 = vcmp.lt.s32.totalorder %v230, 1
    %vm250 = vcmp.lt.s32.totalorder %v230, 2
    %vm251 = vcmp.lt.s32.totalorder %v230, 3
    %vm252 = vcmp.lt.s32.totalorder %v230, 4
    %v253 = vsel %vm249, %v233, %v236
    %v254 = vsel %vm252, %v242, 2102212464
    %v255 = vsel %vm251, %v239, %v254
    %v256 = vsel %vm250, %v253, %v255
    %v257 = vsel %vm249, %v236, %v239
    %v258 = vsel %vm252, %v245, 920167782
    %v259 = vsel %vm251, %v242, %v258
    %v260 = vsel %vm250, %v257, %v259
    %v261 = vsel %vm249, %v239, %v242
    %v262 = vsel %vm252, %v248, 1326507024
    %v263 = vsel %vm251, %v245, %v262
    %v264 = vsel %vm250, %v261, %v263
    %v265 = vshll.u32 %v225, 8
    %v266 = vand.u32 %v265, 65535
    %v267 = vshrl.u32 %v265, 16
    %v268 = vand.u32 %v264, 65535
    %v269 = vshrl.u32 %v264, 16
    %v270 = vmul.u32 %v266, %v268
    %v271 = vmul.u32 %v266, %v269
    %v272 = vmul.u32 %v267, %v268
    %v273 = vmul.u32 %v267, %v269
    %v274 = vshll.u32 %v271, 16
    %v275 = vshrl.u32 %v271, 16
    %v276 = vshll.u32 %v272, 16
    %v277 = vshrl.u32 %v272, 16
    %vm278 = vc.u32 %v270, %v274
    %v279 = vsel %vm278, 1, 0
    %v280 = vadd.s32 %v270, %v274
    %v281 = vadd.s32 %v273, %v279
    %vm282 = vc.u32 %v280, %v276
    %v283 = vsel %vm282, 1, 0
    %v284 = vadd.s32 %v280, %v276
    %v285 = vadd.s32 %v281, %v283
    %v286 = vadd.s32 %v285, %v275
    %v287 = vadd.s32 %v286, %v277
    %v288 = vand.u32 %v265, 65535
    %v289 = vshrl.u32 %v265, 16
    %v290 = vand.u32 %v260, 65535
    %v291 = vshrl.u32 %v260, 16
    %v292 = vmul.u32 %v288, %v290
    %v293 = vmul.u32 %v288, %v291
    %v294 = vmul.u32 %v289, %v290
    %v295 = vmul.u32 %v289, %v291
    %v296 = vshll.u32 %v293, 16
    %v297 = vshrl.u32 %v293, 16
    %v298 = vshll.u32 %v294, 16
    %v299 = vshrl.u32 %v294, 16
    %vm300 = vc.u32 %v292, %v296
    %v301 = vsel %vm300, 1, 0
    %v302 = vadd.s32 %v292, %v296
    %v303 = vadd.s32 %v295, %v301
    %vm304 = vc.u32 %v302, %v298
    %v305 = vsel %vm304, 1, 0
    %v306 = vadd.s32 %v302, %v298
    %v307 = vadd.s32 %v303, %v305
    %v308 = vadd.s32 %v307, %v297
    %v309 = vadd.s32 %v308, %v299
    %v310 = vmul.u32 %v265, %v256
    %v311 = vadd.s32 %v287, %v306
    %vm312 = vc.u32 %v287, %v306
    %v313 = vadd.s32 %v309, 1
    %v314 = vsel %vm312, %v313, %v309
    %v315 = vadd.s32 %v310, %v314
    %v316 = vadd.s32 %v315, 536870912
    %v317 = vshrl.u32 %v316, 30
    %v318 = vshll.u32 %v317, 30
    %v319 = vsub.s32 %v315, %v318
    %vm320 = vcmp.lt.s32.totalorder %v319, 0
    %v321 = vsub.s32 0, %v319
    %v322 = vsel %vm320, %v321, %v319
    %v323 = vclz %v322
    %v324 = vsub.s32 %v323, 2
    %vm325 = vcmp.gt.s32.totalorder 0, %v324
    %v326 = vsel %vm325, 0, %v324
    %v327 = vsub.s32 32, %v326
    %v328 = vshll.u32 %v319, %v326
    %v329 = vshrl.u32 %v311, %v327
    %v330 = vor.u32 %v328, %v329
    %v331 = vsub.s32 4294967266, %v326
    %v332 = vadd.s32 %v331, 127
    %v333 = vshll.u32 %v332, 23
    %v334 = vor.u32 4788187, %v333
    %v335 = vand.u32 2147483647, %v334
    %v337 = vcvt.s32.f32 %v330
    %v338 = vmul.f32 %v337, %v335
    %v339 = vxor.u32 %v338, 2147483648
    %v340 = vsel %vm219, %v339, %v338
    %v341 = vsub.s32 4, %v317
    %v342 = vsel %vm219, %v341, %v317
    %v343 = vsel %vm218, %v60, %v340
    %v344 = vsel %vm218, 0, %v342
    %v345 = vmul.f32 %v343, %v343
    %v346 = vmul.f32 %v345, -0.001358992
    %v347 = vadd.f32 %v346, 0.041655596
    %v348 = vmul.f32 %v345, %v347
    %v349 = vadd.f32 %v348, -0.4999988
    %v350 = vmul.f32 %v345, %v349
    %v351 = vadd.f32 1.0, %v350
    %v352 = vmul.f32 %v343, %v343
    %v353 = vmul.f32 %v352, -0.00019511016
    %v354 = vadd.f32 %v353, 0.008332121
    %v355 = vmul.f32 %v352, %v354
    %v356 = vadd.f32 %v355, -0.16666654
    %v357 = vmul.f32 %v352, %v356
    %v358 = vadd.f32 %v357, 1.0
    %v359 = vmul.f32 %v358, %v343
    %vm360 = vweird.f32 %v60
    %v361 = vand.u32 %v344, 3
    %vm362 = vcmp.lt.s32.totalorder %v361, 2
    %vm363 = vcmp.eq.s32.totalorder %v361, 0
    %v364 = vxor.u32 %v359, 2147483648
    %v365 = vsel %vm363, %v351, %v364
    %vm366 = vcmp.eq.s32.totalorder %v361, 2
    %v367 = vxor.u32 %v351, 2147483648
    %v368 = vsel %vm366, %v367, %v359
    %v369 = vsel %vm362, %v365, %v368
    %v370 = vsel %vm360, nan, %v369
    %371 = vst [vmem:[#allocation8] sm:$0xff] %v370
    // Predicated region
    $region18: #{tpu_custom_call.1} parent=1 // pred_check
      _
    $region19: #{tpu_custom_call.1} parent=1 // pred_check_branch
      %373 = sbr.rel (0) target = $region21
    $region20: #{tpu_custom_call.1} parent=1 // pred_region
      %375 = vsyncadd [#allocation4], 0
      %s377 = sshll.u32 [#allocation7], 4
      %s378 = int_to_ptr.vmem [resolvable:$true] %s377
      %s379 = sshll.u32 %s2, 4
      %s380 = int_to_ptr.hbm [resolvable:$true] %s379
      %382 = dma.vmem_to_hbm [thread:$0]  %s378, 128, %s380, [#allocation4]
    $region21: #{tpu_custom_call.1} parent=1 // pred_fallthru
      _
    // Predicated region
    $region22: #{tpu_custom_call.1} parent=1 // pred_check
      _
    $region23: #{tpu_custom_call.1} parent=1 // pred_check_branch
      %384 = sbr.rel (0) target = $region25
    $region24: #{tpu_custom_call.1} parent=1 // pred_region
      %386 = vsyncadd [#allocation9], 0
      %s388 = sshll.u32 [#allocation8], 4
      %s389 = int_to_ptr.vmem [resolvable:$true] %s388
      %s390 = sshll.u32 %s3, 4
      %s391 = int_to_ptr.hbm [resolvable:$true] %s390
      %393 = dma.vmem_to_hbm [thread:$0]  %s389, 128, %s391, [#allocation9]
    $region25: #{tpu_custom_call.1} parent=1 // pred_fallthru
      _
    // Predicated region
    $region26: #{tpu_custom_call.1} parent=1 // pred_check
      _
    $region27: #{tpu_custom_call.1} parent=1 // pred_check_branch
      %395 = sbr.rel (0) target = $region29
    $region28: #{tpu_custom_call.1} parent=1 // pred_region
      %397 = dma.done [#allocation4], 128
    $region29: #{tpu_custom_call.1} parent=1 // pred_fallthru
      _
    // Predicated region
    $region30: #{tpu_custom_call.1} parent=1 // pred_check
      _
    $region31: #{tpu_custom_call.1} parent=1 // pred_check_branch
      %399 = sbr.rel (0) target = $region33
    $region32: #{tpu_custom_call.1} parent=1 // pred_region
      %401 = dma.done [#allocation9], 128
    $region33: #{tpu_custom_call.1} parent=1 // pred_fallthru
      _
    %402 = vsyncpa [#allocation3], 1
    %403 = vsyncpa [#allocation6], 1
    %404 = vsyncpa [#allocation4], 1
    %405 = vsyncpa [#allocation9], 1

</llo_original>
